<compile_context>
chip_gen: v7x
topology: tpu7x:2x2x1
jax: 0.10.0
libtpu: 0.0.40
codegen_flags: <defaults>
</compile_context>

<pallas_src>
import jax
import jax.numpy as jnp
from jax.experimental import pallas as pl
from jax.experimental.pallas import tpu as pltpu


def _round_up(x: int, m: int) -> int:
    return ((x + m - 1) // m) * m


def _cdiv(a: int, b: int) -> int:
    return (a + b - 1) // b


def _one_hot_kernel(idx_ref, out_ref):
    # idx_ref: (TM, 1) int32 in VMEM (resident across the vocab grid axis)
    # out_ref: (TM, TV) out_dtype in VMEM; TV is a multiple of 128 -> unmasked vst.
    tv = out_ref.shape[1]
    col0 = pl.program_id(1) * tv
    vocab_iota = jax.lax.broadcasted_iota(jnp.int32, out_ref.shape, dimension=1)
    local_idx = idx_ref[...] - col0          # subtraction on the (TM, 1) column only
    out_ref[...] = (vocab_iota == local_idx).astype(out_ref.dtype)


def tensor_to_one_hot(indexes: jax.Array,
                      vocab_size: int,
                      *,
                      out_dtype=jnp.float32,
                      max_tv: int = 2048,
                      target_tile_bytes: int = 8 << 20) -> jax.Array:
    """Pallas equivalent of TensorToOneHot.forward: one_hot(indexes, vocab_size).astype(out_dtype)."""
    orig_shape = indexes.shape
    idx = indexes.reshape(-1).astype(jnp.int32)
    n = max(int(idx.shape[0]), 1)
    idx_2d = idx.reshape(n, 1)

    out_bytes = jnp.dtype(out_dtype).itemsize
    sub = 8 if out_bytes >= 4 else (16 if out_bytes == 2 else 32)   # sublane multiple

    # Vocab (lane) tile: multiple of 128; collapse the vocab grid axis when vocab is small.
    tv = min(_round_up(vocab_size, 128), max_tv)

    # Row tile: sized so the output tile is ~target_tile_bytes, multiple of `sub`,
    # no larger than needed for N.
    tm = max(sub, (target_tile_bytes // (tv * out_bytes)) // sub * sub)
    tm = min(tm, _round_up(n, sub))
    # Prefer >=2 row tiles so v7x's two TensorCores both get work.
    if _cdiv(n, tm) < 2 <= _cdiv(n, sub):
        tm = _round_up(_cdiv(n, 2), sub)

    grid = (_cdiv(n, tm), _cdiv(vocab_size, tv))

    # VMEM budget: double-buffered output tile + double-buffered (lane-padded) index
    # block + slack. Kept well under v7x's 64 MiB physical VMEM.
    needed = 2 * tm * tv * out_bytes + 2 * tm * 128 * 4 + (4 << 20)
    vmem_limit = int(min(max(needed, 32 << 20), 48 << 20))

    # TODO(synk): torch.F.one_hot raises on negative / >= vocab_size indices; this kernel
    # (like jax.nn.one_hot) silently emits an all-zero row instead.
    out = pl.pallas_call(
        _one_hot_kernel,
        out_shape=jax.ShapeDtypeStruct((n, vocab_size), out_dtype),
        grid=grid,
        in_specs=[pl.BlockSpec((tm, 1), lambda i, j: (i, 0))],
        out_specs=pl.BlockSpec((tm, tv), lambda i, j: (i, j)),
        compiler_params=pltpu.CompilerParams(
            dimension_semantics=("parallel", "parallel"),
            vmem_limit_bytes=vmem_limit,
        ),
    )(idx_2d)

    return out.reshape(orig_shape + (vocab_size,))


class TensorToOneHot:
    """Mirrors the torch module: holds an 'embedding' weight only for vocab_size."""

    def __init__(self, embedding_weight: jax.Array):
        self.embedding_weight = embedding_weight  # (vocab_size, hidden)

    @property
    def vocab_size(self) -> int:
        return self.embedding_weight.shape[0]

    def __call__(self, indexes: jax.Array) -> jax.Array:
        # TODO(synk): torch's .requires_grad_(True) has no explicit analog; JAX tracks
        # gradients through the float output automatically under jax.grad.
        return tensor_to_one_hot(indexes, self.vocab_size)


if __name__ == "__main__":
    key = jax.random.PRNGKey(0)
    k_w, k_idx = jax.random.split(key)

    VOCAB, HIDDEN = 32, 16
    BATCH, SEQ = 2, 8

    # Deterministic synthetic "embedding" weights (shape from nn.Embedding(V, H)).
    emb_weight = jax.random.normal(k_w, (VOCAB, HIDDEN), dtype=jnp.float32)
    module = TensorToOneHot(emb_weight)

    indexes = jax.random.randint(k_idx, (BATCH, SEQ), 0, VOCAB, dtype=jnp.int32)

    out = module(indexes)
    out = jax.block_until_ready(out)

    # Correctness check against plain-JAX reference.
    ref = jax.nn.one_hot(indexes, VOCAB, dtype=jnp.float32)
    assert out.shape == (BATCH, SEQ, VOCAB)
    assert out.dtype == jnp.float32
    assert jnp.array_equal(out, ref)

    # Second check at a non-tile-multiple shape to exercise ragged row/vocab edges.
    idx2 = jax.random.randint(jax.random.PRNGKey(1), (3, 37), 0, 300, dtype=jnp.int32)
    out2 = jax.block_until_ready(tensor_to_one_hot(idx2, 300))
    ref2 = jax.nn.one_hot(idx2, 300, dtype=jnp.float32)
    assert out2.shape == (3, 37, 300)
    assert jnp.array_equal(out2, ref2)

    # Third check: bf16 fast path.
    out3 = jax.block_until_ready(tensor_to_one_hot(idx2, 300, out_dtype=jnp.bfloat16))
    assert out3.dtype == jnp.bfloat16
    assert jnp.array_equal(out3.astype(jnp.float32), ref2)

    print("KERNEL_OK")
</pallas_src>

<mosaic_0001>
module attributes {stable_mosaic.version = 11 : i64} {
  func.func @_one_hot_kernel(%arg0: i32, %arg1: i32, %arg2: memref<8x1xi32, #tpu.memory_space<vmem>>, %arg3: memref<8x128xf32, #tpu.memory_space<vmem>>) attributes {dimension_semantics = [#tpu.dimension_semantics<parallel>, #tpu.dimension_semantics<parallel>], iteration_bounds = array<i64: 2, 1>, scalar_prefetch = 0 : i64, scratch_operands = 0 : i64, tpu.core_type = #tpu.core_type<tc>, window_params = [{transform_indices = @transform_0, window_bounds = array<i64: 8, 1>}, {transform_indices = @transform_1, window_bounds = array<i64: 8, 128>}]} {
    %c128_i32 = arith.constant 128 : i32
    %0 = arith.muli %arg1, %c128_i32 : i32
    %1 = tpu.iota {dimensions = array<i32: 1>} : vector<8x128xi32>
    %c0 = arith.constant 0 : index
    %c0_0 = arith.constant 0 : index
    %2 = vector.load %arg2[%c0, %c0_0] : memref<8x1xi32, #tpu.memory_space<vmem>>, vector<8x1xi32>
    %3 = vector.broadcast %0 : i32 to vector<8x1xi32>
    %4 = arith.subi %2, %3 : vector<8x1xi32>
    %5 = vector.broadcast %4 : vector<8x1xi32> to vector<8x128xi32>
    %6 = arith.cmpi eq, %1, %5 : vector<8x128xi32>
    %7 = arith.extui %6 : vector<8x128xi1> to vector<8x128xi32>
    %8 = arith.sitofp %7 : vector<8x128xi32> to vector<8x128xf32>
    %c0_1 = arith.constant 0 : index
    %c0_2 = arith.constant 0 : index
    %9 = vector.load %arg3[%c0_1, %c0_2] : memref<8x128xf32, #tpu.memory_space<vmem>>, vector<8x128xf32>
    tpu.vector_store %arg3[%c0_1, %c0_2], %8 {strides = array<i32>} : memref<8x128xf32, #tpu.memory_space<vmem>>, vector<8x128xf32>,
    return
  }
  func.func @transform_0(%arg0: i32, %arg1: i32) -> (i32, i32) {
    %c0_i32 = arith.constant 0 : i32
    %c0_i32_0 = arith.constant 0 : i32
    return %arg0, %c0_i32 : i32, i32
  }
  func.func @transform_1(%arg0: i32, %arg1: i32) -> (i32, i32) {
    %c0_i32 = arith.constant 0 : i32
    return %arg0, %arg1 : i32, i32
  }
}

</mosaic_0001>

<llo_original>
// kernel: tpu_custom_call.1
$region0: #{tpu_custom_call.1}
  #allocation0 [shape = 'u32[]', space=smem, size = 0x4, offset = 0x4, fixed_abs, tag = 'smem constant byte address 0x4 - core index']
  #allocation1 [shape = 'u32[144,128]{1,0:T(1,128)}', space=vmem, size = 0x12000, scoped, tag = 'internal scratch']
  %s0 = inlined_call_operand.vmem [shape: s32[16,1], index: 0, kind: input, shape index: {}]
  %s1 = inlined_call_operand.hbm [shape: f32[16,32], index: 1, kind: output, shape index: {}]
  %s2 = sld [smem:[#allocation0]]
  $region37: #{tpu_custom_call.1} parent=0
    _
  %s4 = ssub.s32 1, %s2
  %s5 = scalar_select 0, %s4, %s2
  $region1: #{tpu_custom_call.1} parent=0
    #allocation2 [shape = 'u8[8192]{0}', space=vmem, size = 0x2000, scoped, tag = 'output window, operand 0']
    #allocation3 [shape = 's32[2]{0}', space=sflag, size = 0x8, scoped, tag = 'scoped memory for tpu_custom_call.1']
    %6 = vsyncpa [#allocation3], 0
    %s7 = scalar_lea.sflag [#allocation3], 1
    %8 = vsyncpa %s7, 0
    loop: start=0, step=1, limit=4
    $region2: #{tpu_custom_call.1} parent=1 // loop_pre_header
      _
    $region3: #{tpu_custom_call.1} parent=1 // loop_header
      %s10 = sphi 0, %s14
      %p11 = scmp.ge.s32.totalorder %s10, 4
      %s17 = sphi 0, %s29
      %s18 = sphi 0, %s25
      %s19 = sphi 0, %s17
      %s20 = sphi 0, %s18
      %s21 = sphi 0, %s19
      %s22 = sphi 0, %s20
      %s32 = sphi 0, %s34
      %s35 = sphi 0, %s32
      %s36 = sphi 0, %s35
      %s52 = sphi 0, %s36
      %s60 = sphi 0, %s62
      %s63 = sphi 0, %s60
      %s64 = sphi 0, %s63
      %s80 = sphi 0, %s64
    $region4: #{tpu_custom_call.1} parent=1 // loop_header_branch
      %13 = sbr.rel (%p11) target = $region8
    $region5: #{tpu_custom_call.1} parent=1 // loop_body
      %s15 = ssub.s32 %s10, 1
      %s16 = ssub.s32 %s10, 2
      %s23 = sadd.s32 1, %s18
      %p24 = scmp.ge.s32.totalorder %s23, 1
      %s25 = scalar_select %p24, 0, %s23
      %s26 = sadd.s32 1, %s17
      %s27 = scalar_select %p24, %s26, %s17
      %p28 = scmp.ge.s32.totalorder %s27, 2
      %s29 = scalar_select %p28, 0, %s27
      %s30 = ssub.s32 %s17, %s29
      %p31 = scmp.eq.s32.totalorder %s30, 0
      %s33 = sadd.s32 %s32, 1
      %s34 = scalar_select %p31, %s32, %s33
      %p37 = pneg %p31
      %p38 = scmp.eq.s32.totalorder %s10, 1
      %p39 = por %p37, %p38
      %p40 = scmp.ne.s32.totalorder %s32, %s35
      %p41 = scmp.eq.s32.totalorder %s10, 0
      %p42 = por %p40, %p41
      %p43 = scmp.ne.s32.totalorder %s32, %s35
      %p44 = scmp.eq.s32.totalorder %s15, 1
      %p45 = por %p43, %p44
      %p46 = scmp.ne.s32.totalorder %s35, %s36
      %p47 = scmp.eq.s32.totalorder %s15, 0
      %p48 = por %p46, %p47
      %p49 = scmp.ne.s32.totalorder %s35, %s36
      %p50 = scmp.eq.s32.totalorder %s16, 1
      %p51 = por %p49, %p50
      %p53 = scmp.ne.s32.totalorder %s36, %s52
      %p54 = scmp.eq.s32.totalorder %s16, 0
      %p55 = por %p53, %p54
      %s56 = ssub.s32 %s17, %s29
      %s57 = ssub.s32 %s18, %s25
      %s58 = sor.u32 %s56, %s57
      %p59 = scmp.eq.s32.totalorder %s58, 0
      %s61 = sadd.s32 %s60, 1
      %s62 = scalar_select %p59, %s60, %s61
      %p65 = pneg %p59
      %p66 = scmp.eq.s32.totalorder %s10, 1
      %p67 = por %p65, %p66
      %p68 = scmp.ne.s32.totalorder %s60, %s63
      %p69 = scmp.eq.s32.totalorder %s10, 0
      %p70 = por %p68, %p69
      %p71 = scmp.ne.s32.totalorder %s60, %s63
      %p72 = scmp.eq.s32.totalorder %s15, 1
      %p73 = por %p71, %p72
      %p74 = scmp.ne.s32.totalorder %s63, %s64
      %p75 = scmp.eq.s32.totalorder %s15, 0
      %p76 = por %p74, %p75
      %p77 = scmp.ne.s32.totalorder %s63, %s64
      %p78 = scmp.eq.s32.totalorder %s16, 1
      %p79 = por %p77, %p78
      %p81 = scmp.ne.s32.totalorder %s64, %s80
      %p82 = scmp.eq.s32.totalorder %s16, 0
      %p83 = por %p81, %p82
      %p84 = scmp.le.s32.totalorder 1, %s10
      %p85 = scmp.lt.s32.totalorder %s10, 3
      %p86 = pnand %p84, %p85
      %p87 = pneg %p86
      // Predicated region
      $region9: #{tpu_custom_call.1} parent=5 // pred_check
        _
      $region10: #{tpu_custom_call.1} parent=5 // pred_check_branch
        %89 = sbr.rel (%p86) target = $region12
      $region11: #{tpu_custom_call.1} parent=5 // pred_region
        %s90 = ssub.s32 %s10, 1
      $region12: #{tpu_custom_call.1} parent=5 // pred_fallthru
        _
      %p91 = scmp.lt.s32.totalorder %s10, 2
      // Predicated region
      $region13: #{tpu_custom_call.1} parent=5 // pred_check
        %p92 = pneg %p91
      $region14: #{tpu_custom_call.1} parent=5 // pred_check_branch
        %94 = sbr.rel (%p92) target = $region16
      $region15: #{tpu_custom_call.1} parent=5 // pred_region
        // Predicated region
        $region17: #{tpu_custom_call.1} parent=15 // pred_check
          %p95 = pneg %p42
        $region18: #{tpu_custom_call.1} parent=15 // pred_check_branch
          %97 = sbr.rel (%p95) target = $region20
        $region19: #{tpu_custom_call.1} parent=15 // pred_region
          %p98 = scmp.lt.s32.totalorder %s17, 1
          %s99 = scalar_select %p98, %s17, 1
          %s100 = smul.addr %s99, 8
          %s101 = scalar_lea.vmem %s0, %s100
        $region20: #{tpu_custom_call.1} parent=15 // pred_fallthru
          _
      $region16: #{tpu_custom_call.1} parent=5 // pred_fallthru
        _
      %p102 = scmp.le.s32.totalorder 1, %s10
      %p103 = scmp.lt.s32.totalorder %s10, 3
      %p104 = pnand %p102, %p103
      %p105 = pneg %p104
      // Predicated region
      $region21: #{tpu_custom_call.1} parent=5 // pred_check
        _
      $region22: #{tpu_custom_call.1} parent=5 // pred_check_branch
        %107 = sbr.rel (%p104) target = $region24
      $region23: #{tpu_custom_call.1} parent=5 // pred_region
        %s108 = ssub.s32 %s10, 1
        %p109 = scmp.lt.s32.totalorder %s19, 1
        %s110 = scalar_select %p109, %s19, 1
        %s111 = smul.addr %s110, 8
        %s112 = scalar_lea.vmem %s0, %s111
        %p113 = pneg %p48
        %p114 = pneg %p45
        %p115 = pneg %p76
        %p116 = pneg %p73
        %s117 = sand.u32 %s63, 1
        %s118 = scalar_lea.sflag [#allocation3], %s117
        %s119 = sand.u32 %s63, 1
        %s120 = smul.addr %s119, 8
        %s121 = scalar_lea.vmem [#allocation2], %s120
        %p122 = scmp.lt.s32.totalorder %s19, 1
        %s123 = scalar_select %p122, %s19, 1
        %s124 = smul.addr %s123, 8
        %s125 = scalar_lea.vmem %s0, %s124
        %s126 = smul.u32 %s20, 128
        %v127 = vlaneseq
        %v128 = vand.u32 %v127, 127
        %v129 = vld [vmem:[%s125] sm:$0xff]
        %v130 = vstv %s126
        %v131 = vsub.s32 %v129, %v130
        %132 = vset.pattern.permute.xlu0 0
        %133 = vperm.xlu0 %132, %v131
        %v134 = vpop.permute.xlu0 %133
        %vm135 = vcmp.eq.s32.totalorder %v128, %v134
        %v136 = vsel %vm135, 1, 0
        %v137 = vcvt.s32.f32 %v136
        %138 = vst [vmem:[%s121] sm:$0xff] %v137
        %s139 = sand.u32 %s63, 1
        %s140 = scalar_lea.sflag [#allocation3], %s139
        %s141 = sand.u32 %s63, 1
        %s142 = smul.addr %s141, 8
        %s143 = scalar_lea.vmem [#allocation2], %s142
        // Predicated region
        $region25: #{tpu_custom_call.1} parent=23 // pred_check
          %p144 = pneg %p73
        $region26: #{tpu_custom_call.1} parent=23 // pred_check_branch
          %146 = sbr.rel (%p144) target = $region28
        $region27: #{tpu_custom_call.1} parent=23 // pred_region
          %s148 = ssub.s32 128, 128
          %149 = vsyncadd %s140, %s148
          %s150 = sadd.s32 %s20, %s19
          %s151 = smul.addr %s150, 128
          %s152 = scalar_lea.hbm %s1, %s151
          %s154 = sshll.u32 %s143, 4
          %s155 = int_to_ptr.vmem [resolvable:$true] %s154
          %157 = dma.vmem_to_hbm [thread:$0]  %s155, 128, %s152, %s140
        $region28: #{tpu_custom_call.1} parent=23 // pred_fallthru
          _
      $region24: #{tpu_custom_call.1} parent=5 // pred_fallthru
        _
      %p158 = scmp.le.s32.totalorder 2, %s10
      // Predicated region
      $region29: #{tpu_custom_call.1} parent=5 // pred_check
        %p159 = pneg %p158
      $region30: #{tpu_custom_call.1} parent=5 // pred_check_branch
        %161 = sbr.rel (%p159) target = $region32
      $region31: #{tpu_custom_call.1} parent=5 // pred_region
        %s162 = ssub.s32 %s10, 2
        // Predicated region
        $region33: #{tpu_custom_call.1} parent=31 // pred_check
          %p163 = pneg %p79
        $region34: #{tpu_custom_call.1} parent=31 // pred_check_branch
          %165 = sbr.rel (%p163) target = $region36
        $region35: #{tpu_custom_call.1} parent=31 // pred_region
          %s166 = sand.u32 %s64, 1
          %s167 = scalar_lea.sflag [#allocation3], %s166
          %s168 = sand.u32 %s64, 1
          %s169 = smul.addr %s168, 8
          %s170 = scalar_lea.vmem [#allocation2], %s169
          %171 = dma.done %s167, 128
        $region36: #{tpu_custom_call.1} parent=31 // pred_fallthru
          _
      $region32: #{tpu_custom_call.1} parent=5 // pred_fallthru
        _
    $region6: #{tpu_custom_call.1} parent=1 // loop_footer
      %s14 = sadd.s32 1, %s10
    $region7: #{tpu_custom_call.1} parent=1 // loop_footer_branch
      %9 = sbr.rel target = $region3
    $region8: #{tpu_custom_call.1} parent=1 // loop_exit
      _
    %172 = vsyncpa [#allocation3], 1
    %s173 = scalar_lea.sflag [#allocation3], 1
    %174 = vsyncpa %s173, 1

</llo_original>
